<compile_context>
chip_gen: v7x
topology: tpu7x:2x2x1
jax: 0.10.0
libtpu: 0.0.40
codegen_flags: <defaults>
</compile_context>

<pallas_src>
import jax
import jax.numpy as jnp
from jax.experimental import pallas as pl
from jax.experimental.pallas import tpu as pltpu

# Module defaults. NOTE: the asym-weight computation below is specialised for
# exactly these exponents (gamma_pos=1 -> linear, gamma_neg=3 -> cube).
GAMMA_POS = 1.0
GAMMA_NEG = 3.0
EPS = 0.1


def _asl_kernel(logits_ref, labels_ref, out_ref):
    """One batch tile.

    logits_ref: (TB, C) native dtype; labels_ref: (TB, 1) int32 (-1 marks a padded row).
    Writes per-class partial loss sums for this tile into out_ref: (1, 1, C) f32.
    """
    logits = logits_ref[...].astype(jnp.float32)            # in-kernel upcast (VPU, free vs mem bound)
    labels = labels_ref[...]                                 # (TB, 1) int32
    TB, C = logits.shape

    col = jax.lax.broadcasted_iota(jnp.int32, (TB, C), 1)
    is_target = col == labels                                # (TB, C) bool
    valid = (labels >= 0).astype(jnp.float32)                # (TB, 1); zeroes padded rows

    # Numerically stable log-softmax, sharing a single exp.
    m = jnp.max(logits, axis=-1, keepdims=True)
    shifted = logits - m
    e = jnp.exp(shifted)
    s = jnp.sum(e, axis=-1, keepdims=True)
    log_preds = shifted - jnp.log(s)                         # log_softmax
    probs = e * pl.reciprocal(s, approx=True)                # reuse exp; near-free EUP reciprocal

    # Asymmetric focusing weight without jnp.power:
    #   target class:     (1 - p)^gamma_pos = 1 - p
    #   non-target class:  p^gamma_neg      = p * p * p
    asym_w = jnp.where(is_target, 1.0 - probs, probs * probs * probs)

    # Label smoothing: t*(1-eps) + eps/C.
    smoothed = jnp.where(is_target, 1.0 - EPS + EPS / C, EPS / C)

    loss_terms = (-smoothed) * (log_preds * asym_w) * valid  # (TB, C)

    # Sublane (within-tile batch) reduction only -> lane-dense (1,1,C) partial sums.
    out_ref[...] = jnp.sum(loss_terms, axis=0)[None, None, :]


def _pick_batch_tile(batch, num_classes):
    # Keep one f32 working tile at ~<=2 MiB so double buffering plus elementwise
    # temporaries stay well inside a 32 MiB scoped-VMEM budget (safe across
    # v5e / v6e / v7x; v7x has only 64 MiB physical VMEM).
    budget_rows = max(8, (2 * 1024 * 1024) // (num_classes * 4))
    tb = min(1024, budget_rows)
    tb = max(8, (tb // 8) * 8)
    tb = min(tb, ((batch + 7) // 8) * 8)   # never exceed the padded batch
    return tb


def asymmetric_loss_single_label_onehot(logits, targets_onehot):
    """logits: [B, C] (any float dtype), targets_onehot: [B, C] one-hot. Returns scalar f32."""
    B, C = logits.shape
    # torch.max(targets_onehot, dim=1)[1] -> first-max index; tiny XLA reduce outside the kernel.
    labels = jnp.argmax(targets_onehot, axis=1).astype(jnp.int32)

    tb = _pick_batch_tile(B, C)
    num_tiles = pl.cdiv(B, tb)
    Bp = num_tiles * tb
    if Bp != B:
        # Pad the ragged last tile; padded rows get label = -1 and are masked in-kernel.
        logits = jnp.pad(logits, ((0, Bp - B), (0, 0)))
        labels = jnp.pad(labels, (0, Bp - B), constant_values=-1)
    labels2d = labels.reshape(Bp, 1)

    partials = pl.pallas_call(
        _asl_kernel,
        out_shape=jax.ShapeDtypeStruct((num_tiles, 1, C), jnp.float32),
        grid=(num_tiles,),
        in_specs=[
            pl.BlockSpec((tb, C), lambda i: (i, 0)),   # logits tile, native dtype
            pl.BlockSpec((tb, 1), lambda i: (i, 0)),   # int32 label column
        ],
        out_specs=pl.BlockSpec((1, 1, C), lambda i: (i, 0, 0)),
        compiler_params=pltpu.CompilerParams(
            dimension_semantics=("parallel",),
            vmem_limit_bytes=32 * 1024 * 1024,
        ),
    )(logits, labels2d)

    # Tiny final reduction outside the kernel; divide by the TRUE batch size.
    return jnp.sum(partials) / B


def _reference(logits, targets_onehot):
    # Pure-JAX reference (original formulation with jnp.power) for sanity checking.
    B, C = logits.shape
    idx = jnp.argmax(targets_onehot, axis=1)
    t = jax.nn.one_hot(idx, C, dtype=jnp.float32)
    a = 1.0 - t
    logp = jax.nn.log_softmax(logits.astype(jnp.float32), axis=-1)
    p = jnp.exp(logp)
    w = jnp.power(1.0 - p * t - (1.0 - p) * a, GAMMA_POS * t + GAMMA_NEG * a)
    sm = t * (1.0 - EPS) + EPS / C
    return jnp.mean(jnp.sum(-sm * (logp * w), axis=-1))


if __name__ == "__main__":
    key = jax.random.PRNGKey(0)
    k1, k2, k3, k4 = jax.random.split(key, 4)

    # Case 1: tile-aligned batch.
    B, C = 8, 128
    logits = jax.random.normal(k1, (B, C), dtype=jnp.float32)
    labels = jax.random.randint(k2, (B,), 0, C)
    onehot = jax.nn.one_hot(labels, C, dtype=jnp.float32)
    loss = jax.block_until_ready(asymmetric_loss_single_label_onehot(logits, onehot))
    ref = jax.block_until_ready(_reference(logits, onehot))
    assert jnp.allclose(loss, ref, rtol=2e-3, atol=2e-3), (loss, ref)

    # Case 2: ragged batch (exercises wrapper padding + in-kernel row masking).
    B2, C2 = 13, 128
    logits2 = jax.random.normal(k3, (B2, C2), dtype=jnp.float32)
    labels2 = jax.random.randint(k4, (B2,), 0, C2)
    onehot2 = jax.nn.one_hot(labels2, C2, dtype=jnp.float32)
    loss2 = jax.block_until_ready(asymmetric_loss_single_label_onehot(logits2, onehot2))
    ref2 = jax.block_until_ready(_reference(logits2, onehot2))
    assert jnp.allclose(loss2, ref2, rtol=2e-3, atol=2e-3), (loss2, ref2)

    print("KERNEL_OK")
</pallas_src>

<mosaic_0001>
module attributes {stable_mosaic.version = 11 : i64} {
  func.func @_asl_kernel(%arg0: i32, %arg1: memref<8x128xf32, #tpu.memory_space<vmem>>, %arg2: memref<8x1xi32, #tpu.memory_space<vmem>>, %arg3: memref<1x1x128xf32, #tpu.memory_space<vmem>>) attributes {dimension_semantics = [#tpu.dimension_semantics<parallel>], iteration_bounds = array<i64: 1>, scalar_prefetch = 0 : i64, scratch_operands = 0 : i64, tpu.core_type = #tpu.core_type<tc>, window_params = [{transform_indices = @transform_0, window_bounds = array<i64: 8, 128>}, {transform_indices = @transform_1, window_bounds = array<i64: 8, 1>}, {transform_indices = @transform_2, window_bounds = array<i64: 1, 1, 128>}]} {
    %c0 = arith.constant 0 : index
    %c0_0 = arith.constant 0 : index
    %0 = vector.load %arg1[%c0, %c0_0] : memref<8x128xf32, #tpu.memory_space<vmem>>, vector<8x128xf32>
    %c0_1 = arith.constant 0 : index
    %c0_2 = arith.constant 0 : index
    %1 = vector.load %arg2[%c0_1, %c0_2] : memref<8x1xi32, #tpu.memory_space<vmem>>, vector<8x1xi32>
    %2 = tpu.iota {dimensions = array<i32: 1>} : vector<8x128xi32>
    %3 = vector.broadcast %1 : vector<8x1xi32> to vector<8x128xi32>
    %4 = arith.cmpi eq, %2, %3 : vector<8x128xi32>
    %c0_i32 = arith.constant 0 : i32
    %5 = vector.broadcast %c0_i32 : i32 to vector<8x1xi32>
    %6 = arith.cmpi sge, %1, %5 : vector<8x1xi32>
    %7 = arith.extui %6 : vector<8x1xi1> to vector<8x1xi32>
    %8 = arith.sitofp %7 : vector<8x1xi32> to vector<8x1xf32>
    %cst = arith.constant dense<0xFF800000> : vector<8xf32>
    %9 = vector.multi_reduction <maximumf>, %0, %cst [1] : vector<8x128xf32> to vector<8xf32>
    %10 = vector.shape_cast %9 : vector<8xf32> to vector<8x1xf32>
    %11 = vector.broadcast %10 : vector<8x1xf32> to vector<8x128xf32>
    %12 = arith.subf %0, %11 : vector<8x128xf32>
    %13 = math.exp %12 : vector<8x128xf32>
    %cst_3 = arith.constant dense<0.000000e+00> : vector<8xf32>
    %14 = vector.multi_reduction <add>, %13, %cst_3 [1] : vector<8x128xf32> to vector<8xf32>
    %15 = vector.shape_cast %14 : vector<8xf32> to vector<8x1xf32>
    %16 = math.log %15 : vector<8x1xf32>
    %17 = vector.broadcast %16 : vector<8x1xf32> to vector<8x128xf32>
    %18 = arith.subf %12, %17 : vector<8x128xf32>
    %19 = tpu.reciprocal %15 {approx = true} : vector<8x1xf32> -> vector<8x1xf32>
    %20 = vector.broadcast %19 : vector<8x1xf32> to vector<8x128xf32>
    %21 = arith.mulf %13, %20 : vector<8x128xf32>
    %cst_4 = arith.constant 1.000000e+00 : f32
    %22 = vector.broadcast %cst_4 : f32 to vector<8x128xf32>
    %23 = arith.subf %22, %21 : vector<8x128xf32>
    %24 = arith.mulf %21, %21 : vector<8x128xf32>
    %25 = arith.mulf %24, %21 : vector<8x128xf32>
    %26 = arith.select %4, %23, %25 : vector<8x128xi1>, vector<8x128xf32>
    %cst_5 = arith.constant 0.900781273 : f32
    %cst_6 = arith.constant 7.812500e-04 : f32
    %27 = vector.broadcast %cst_5 : f32 to vector<8x128xf32>
    %28 = vector.broadcast %cst_6 : f32 to vector<8x128xf32>
    %29 = arith.select %4, %27, %28 : vector<8x128xi1>, vector<8x128xf32>
    %cst_7 = arith.constant 0.000000e+00 : f32
    %30 = vector.broadcast %cst_7 : f32 to vector<8x128xf32>
    %31 = arith.subf %30, %29 : vector<8x128xf32>
    %32 = arith.mulf %18, %26 : vector<8x128xf32>
    %33 = arith.mulf %31, %32 : vector<8x128xf32>
    %34 = vector.broadcast %8 : vector<8x1xf32> to vector<8x128xf32>
    %35 = arith.mulf %33, %34 : vector<8x128xf32>
    %cst_8 = arith.constant dense<0.000000e+00> : vector<128xf32>
    %36 = vector.multi_reduction <add>, %35, %cst_8 [0] : vector<8x128xf32> to vector<128xf32>
    %37 = vector.shape_cast %36 : vector<128xf32> to vector<1x1x128xf32>
    %c0_9 = arith.constant 0 : index
    %c0_10 = arith.constant 0 : index
    %c0_11 = arith.constant 0 : index
    %38 = vector.load %arg3[%c0_9, %c0_10, %c0_11] : memref<1x1x128xf32, #tpu.memory_space<vmem>>, vector<1x1x128xf32>
    tpu.vector_store %arg3[%c0_9, %c0_10, %c0_11], %37 {strides = array<i32>} : memref<1x1x128xf32, #tpu.memory_space<vmem>>, vector<1x1x128xf32>,
    return
  }
  func.func @transform_0(%arg0: i32) -> (i32, i32) {
    %c0_i32 = arith.constant 0 : i32
    %c0_i32_0 = arith.constant 0 : i32
    return %arg0, %c0_i32 : i32, i32
  }
  func.func @transform_1(%arg0: i32) -> (i32, i32) {
    %c0_i32 = arith.constant 0 : i32
    %c0_i32_0 = arith.constant 0 : i32
    return %arg0, %c0_i32 : i32, i32
  }
  func.func @transform_2(%arg0: i32) -> (i32, i32, i32) {
    %c0_i32 = arith.constant 0 : i32
    %c0_i32_0 = arith.constant 0 : i32
    %c0_i32_1 = arith.constant 0 : i32
    return %arg0, %c0_i32, %c0_i32_0 : i32, i32, i32
  }
}

</mosaic_0001>

<llo_original>
// kernel: tpu_custom_call.1
$region0: #{tpu_custom_call.1}
  #allocation0 [shape = 'u32[]', space=smem, size = 0x4, offset = 0x4, fixed_abs, tag = 'smem constant byte address 0x4 - core index']
  #allocation1 [shape = 'u32[144,128]{1,0:T(1,128)}', space=vmem, size = 0x12000, scoped, tag = 'internal scratch']
  %s0 = inlined_call_operand.vmem [shape: f32[8,128], index: 0, kind: input, shape index: {}]
  %s1 = inlined_call_operand.vmem [shape: s32[8,1], index: 1, kind: input, shape index: {}]
  %s2 = inlined_call_operand.hbm [shape: f32[1,1,128], index: 2, kind: output, shape index: {}]
  %s3 = sld [smem:[#allocation0]]
  $region18: #{tpu_custom_call.1} parent=0
    _
  %s5 = ssub.s32 1, %s3
  %s6 = scalar_select 0, %s5, %s3
  $region1: #{tpu_custom_call.1} parent=0
    #allocation2 [shape = 'u8[512]{0}', space=vmem, size = 0x400, scoped, tag = 'output window, operand 0, single buffered']
    #allocation3 [shape = 's32[1]{0}', space=sflag, size = 0x4, scoped, tag = 'scoped memory for tpu_custom_call.1']
    %7 = vsyncpa [#allocation3], 0
    // Predicated region
    $region2: #{tpu_custom_call.1} parent=1 // pred_check
      _
    $region3: #{tpu_custom_call.1} parent=1 // pred_check_branch
      %9 = sbr.rel (0) target = $region5
    $region4: #{tpu_custom_call.1} parent=1 // pred_region
      _
    $region5: #{tpu_custom_call.1} parent=1 // pred_fallthru
      _
    // Predicated region
    $region6: #{tpu_custom_call.1} parent=1 // pred_check
      _
    $region7: #{tpu_custom_call.1} parent=1 // pred_check_branch
      %11 = sbr.rel (0) target = $region9
    $region8: #{tpu_custom_call.1} parent=1 // pred_region
      _
    $region9: #{tpu_custom_call.1} parent=1 // pred_fallthru
      _
    %v12 = vld [vmem:[%s0] sm:$0xff]
    %v13 = vld [vmem:[%s1] sm:$0xff]
    %v14 = vlaneseq
    %v15 = vand.u32 %v14, 127
    %16 = vset.pattern.permute.xlu0 0
    %17 = vperm.xlu0 %16, %v13
    %v18 = vpop.permute.xlu0 %17
    %vm19 = vcmp.eq.s32.totalorder %v15, %v18
    %vm20 = vcmp.ge.s32.totalorder %v13, 0
    %v21 = vsel %vm20, 1, 0
    %v22 = vcvt.s32.f32 %v21
    %23 = vmax.xlane.f32.xlu0 %v12
    %v24 = vpop.xlane.xlu0 %23
    %v25 = vsub.f32 %v12, %v24
    %v26 = vmul.f32 %v25, 1.442695
    %v27 = vpow.pop %v26
    %28 = vadd.xlane.f32.xlu0 %v27
    %v29 = vpop.xlane.xlu0 %28
    %v30 = vlog2.pop %v29
    %v31 = vmul.f32 %v30, 0.6931472
    %v32 = vsub.f32 %v25, %v31
    %v33 = vrcp.pop %v29
    %v34 = vmul.f32 %v27, %v33
    %v35 = vsub.f32 1.0, %v34
    %v36 = vmul.f32 %v34, %v34
    %v37 = vmul.f32 %v36, %v34
    %v38 = vsel %vm19, %v35, %v37
    %v39 = vsel %vm19, 0.9007813, 0.00078125
    %v40 = vsub.f32 0.0, %v39
    %v41 = vmul.f32 %v32, %v38
    %v42 = vmul.f32 %v40, %v41
    %44 = vset.pattern.permute.xlu0 0
    %45 = vperm.xlu0 %44, %v22
    %v46 = vpop.permute.xlu0 %45
    %v48 = vmul.f32 %v42, %v46
    %v49 = vrot.slane %v48, 4
    %v50 = vadd.f32 %v48, %v49
    %v51 = vrot.slane %v50, 2
    %v52 = vadd.f32 %v50, %v51
    %v53 = vrot.slane %v52, 1
    %v54 = vadd.f32 %v52, %v53
    %55 = vst [vmem:[#allocation2] sm:$0x1] %v54
    // Predicated region
    $region10: #{tpu_custom_call.1} parent=1 // pred_check
      _
    $region11: #{tpu_custom_call.1} parent=1 // pred_check_branch
      %57 = sbr.rel (0) target = $region13
    $region12: #{tpu_custom_call.1} parent=1 // pred_region
      %s59 = ssub.s32 16, 16
      %60 = vsyncadd [#allocation3], %s59
      %s62 = sshll.u32 [#allocation2], 4
      %s63 = int_to_ptr.vmem [resolvable:$true] %s62
      %65 = dma.vmem_to_hbm [thread:$0]  %s63, 16, %s2, [#allocation3]
    $region13: #{tpu_custom_call.1} parent=1 // pred_fallthru
      _
    // Predicated region
    $region14: #{tpu_custom_call.1} parent=1 // pred_check
      _
    $region15: #{tpu_custom_call.1} parent=1 // pred_check_branch
      %67 = sbr.rel (0) target = $region17
    $region16: #{tpu_custom_call.1} parent=1 // pred_region
      %68 = dma.done [#allocation3], 16
    $region17: #{tpu_custom_call.1} parent=1 // pred_fallthru
      _
    %69 = vsyncpa [#allocation3], 1

</llo_original>
